<compile_context>
chip_gen: v6e
topology: v6e:2x2x1
jax: 0.10.0
libtpu: 0.0.40
codegen_flags: <defaults>
</compile_context>

<pallas_src>
import functools

import jax
import jax.numpy as jnp
from jax.experimental import pallas as pl
from jax.experimental.pallas import tpu as pltpu


_GRAY_COEFFS = (65.738 / 256.0, 129.057 / 256.0, 25.064 / 256.0)


def _vmem_capacity_bytes(default=64 * 1024 * 1024):
    """Physical VMEM of the local chip (v5e/v6e: 128 MiB, v7x: 64 MiB), safe fallback."""
    try:
        cap = getattr(pltpu.get_tpu_info(), "vmem_capacity_bytes", None)
        if cap:
            return int(cap)
    except Exception:
        pass
    return default


def _choose_packing(n, wg):
    """Pick P = number of (guarded) planes packed side-by-side along the lane axis.

    The packed lane extent P*wg is later zero-padded up to a multiple of 128, so we
    pick the P (capped at N -- zero pad lanes and zero pad planes cost the same
    bytes) that minimizes that padding waste; smaller P wins ties.
    """
    best_p, best_lpad, best_key = 1, pl.cdiv(wg, 128) * 128, None
    max_p = max(1, min(n, 1024 // wg)) if wg <= 1024 else 1
    for p in range(1, max_p + 1):
        lpad = pl.cdiv(p * wg, 128) * 128
        key = ((lpad - p * wg) / lpad, p)
        if best_key is None or key < best_key:
            best_key, best_p, best_lpad = key, p, lpad
    return best_p, best_lpad


def _grad_kernel(x_ref, o_ref, *, coeffs):
    """Fused grayscale + separable Sobel + magnitude over one block of packed rows.

    x_ref: (C, R, L) block in the native input dtype; o_ref: (R, L) f32.
    Zero boundary conditions of the convs come entirely from the guard columns,
    guard rows and lane padding of the packed layout, so plain circular rotates
    are exact.
    """
    g = coeffs[0] * x_ref[0].astype(jnp.float32)
    for c in range(1, len(coeffs)):
        g = g + coeffs[c] * x_ref[c].astype(jnp.float32)
    r, l = g.shape

    # Column (lane-axis) 3-tap pass on the XLU.
    g_a = pltpu.roll(g, shift=1, axis=1)
    g_b = pltpu.roll(g, shift=l - 1, axis=1)
    s = g_a + 2.0 * g + g_b                 # cols [ 1, 2, 1]
    d = g_b - g_a                           # cols [-1, 0, 1] (sign immaterial)

    # Row (sublane-axis) 3-tap pass on the XLU.
    s_a = pltpu.roll(s, shift=1, axis=0)
    s_b = pltpu.roll(s, shift=r - 1, axis=0)
    d_a = pltpu.roll(d, shift=1, axis=0)
    d_b = pltpu.roll(d, shift=r - 1, axis=0)

    x_v = s_b - s_a                         # rows [-1, 0, 1] x cols [ 1, 2, 1]
    x_h = d_a + 2.0 * d + d_b               # rows [ 1, 2, 1] x cols [-1, 0, 1]

    o_ref[...] = jnp.sqrt(x_v * x_v + x_h * x_h + 1e-6)


def grad_layer_pallas(x):
    assert x.ndim == 4, x.shape
    N, C, H, W = x.shape
    assert C in (1, 3), "GradLayer conv has a single input channel; C must be 1 or 3"
    coeffs = _GRAY_COEFFS if C == 3 else (1.0,)

    # ---- packed layout parameters -------------------------------------------
    Wg = W + 1                               # + one zero guard column per plane
    P, L_pad = _choose_packing(N, Wg)        # planes per lane row; padded lane extent
    L = P * Wg
    Hp = pl.cdiv(H + 1, 8) * 8               # >= 1 zero guard row, sublane aligned
    Np = pl.cdiv(N, P) * P                   # batch padded to a multiple of P
    G = Np // P                              # plane-groups stacked along rows

    # ---- generation-aware tile sizing ---------------------------------------
    vmem_cap = _vmem_capacity_bytes()
    vmem_limit = max(16 << 20, vmem_cap // 2)
    budget = vmem_limit // 2                 # headroom for compiler temporaries
    in_item = x.dtype.itemsize
    # Per plane-group per step: 2x double-buffered input, 2x output, ~8 live f32 temps.
    unit = Hp * L_pad * (2 * C * in_item + 2 * 4 + 8 * 4)
    max_bg = max(1, budget // unit)
    if G >= 2:                               # keep >= 2 grid steps (v7x megacore)
        max_bg = min(max_bg, pl.cdiv(G, min(G, 4)))
    Bg = max(1, min(max_bg, G))              # plane-groups per grid step
    steps = pl.cdiv(G, Bg)
    Gp = steps * Bg

    need = unit * Bg + (2 << 20)
    if need > vmem_limit:
        # A single plane-group barely fits; raise the scoped limit as far as is safe.
        # TODO(synk): add an H-tiling grid axis with a 1-row halo so HD-class planes
        # stay in the multi-MiB tile regime instead of needing a whole plane in VMEM.
        vmem_limit = max(vmem_limit, min(need, vmem_cap - (8 << 20)))

    # ---- wrapper-side packing (pure layout plumbing, native dtype) ----------
    xpad = jnp.pad(x, ((0, Np - N), (0, 0), (0, Hp - H), (0, 1)))
    xp = (xpad.reshape(G, P, C, Hp, Wg)
              .transpose(2, 0, 3, 1, 4)      # (C, G, Hp, P, Wg)
              .reshape(C, G, Hp, L))
    xp = jnp.pad(xp, ((0, 0), (0, Gp - G), (0, 0), (0, L_pad - L)))
    xp = xp.reshape(C, Gp * Hp, L_pad)

    kernel = functools.partial(_grad_kernel, coeffs=coeffs)
    block_rows = Bg * Hp

    out2d = pl.pallas_call(
        kernel,
        out_shape=jax.ShapeDtypeStruct((Gp * Hp, L_pad), jnp.float32),
        grid=(steps,),
        in_specs=[pl.BlockSpec((C, block_rows, L_pad), lambda i: (0, i, 0))],
        out_specs=pl.BlockSpec((block_rows, L_pad), lambda i: (i, 0)),
        compiler_params=pltpu.CompilerParams(
            dimension_semantics=("parallel",),
            vmem_limit_bytes=int(vmem_limit),
        ),
    )(xp)

    # ---- unpack back to (N, 1, H, W) -----------------------------------------
    out = out2d.reshape(Gp, Hp, L_pad)[:G, :H, :L]
    out = out.reshape(G, H, P, Wg)[..., :W]
    out = out.transpose(0, 2, 1, 3).reshape(Np, H, W)[:N]
    return out[:, None, :, :]


def grad_layer_reference(x):
    """Pure-JAX reference mirroring the PyTorch module (for verification)."""
    x = x.astype(jnp.float32)
    if x.shape[1] == 3:
        c = jnp.asarray([65.738, 129.057, 25.064], dtype=jnp.float32) / 256.0
        x = jnp.sum(x * c[None, :, None, None], axis=1, keepdims=True)
    kv = jnp.asarray([[-1., -2., -1.], [0., 0., 0.], [1., 2., 1.]],
                     dtype=jnp.float32).reshape(1, 1, 3, 3)
    kh = jnp.asarray([[-1., 0., 1.], [-2., 0., 2.], [-1., 0., 1.]],
                     dtype=jnp.float32).reshape(1, 1, 3, 3)
    dn = ("NCHW", "OIHW", "NCHW")
    xv = jax.lax.conv_general_dilated(x, kv, (1, 1), ((1, 1), (1, 1)),
                                      dimension_numbers=dn)
    xh = jax.lax.conv_general_dilated(x, kh, (1, 1), ((1, 1), (1, 1)),
                                      dimension_numbers=dn)
    return jnp.sqrt(xv * xv + xh * xh + 1e-6)


if __name__ == "__main__":
    key = jax.random.PRNGKey(0)
    cases = [
        ((2, 3, 16, 16), jnp.float32),    # RGB -> grayscale path (main case)
        ((3, 1, 13, 20), jnp.float32),    # single-channel path, odd H/W padding
        ((40, 3, 16, 16), jnp.bfloat16),  # native bf16 input, multi-step grid
    ]
    for shape, dtype in cases:
        key, sub = jax.random.split(key)
        X = jax.random.uniform(sub, shape, dtype=jnp.float32).astype(dtype)
        out = jax.block_until_ready(grad_layer_pallas(X))
        ref = jax.block_until_ready(grad_layer_reference(X))
        assert out.shape == (shape[0], 1, shape[2], shape[3]), out.shape
        assert bool(jnp.all(jnp.isfinite(out)))
        err = float(jnp.max(jnp.abs(out - ref)))
        assert err < 1e-3, (shape, str(dtype), err)
    print("KERNEL_OK")
</pallas_src>

<mosaic_0001>
module attributes {stable_mosaic.version = 11 : i64} {
  func.func @_grad_kernel(%arg0: i32, %arg1: memref<3x24x128xf32, #tpu.memory_space<vmem>>, %arg2: memref<24x128xf32, #tpu.memory_space<vmem>>) attributes {dimension_semantics = [#tpu.dimension_semantics<parallel>], iteration_bounds = array<i64: 1>, scalar_prefetch = 0 : i64, scratch_operands = 0 : i64, tpu.core_type = #tpu.core_type<tc>, window_params = [{transform_indices = @transform_0, window_bounds = array<i64: 3, 24, 128>}, {transform_indices = @transform_1, window_bounds = array<i64: 24, 128>}]} {
    %c0 = arith.constant 0 : index
    %c0_0 = arith.constant 0 : index
    %c0_1 = arith.constant 0 : index
    %0 = vector.load %arg1[%c0, %c0_0, %c0_1] : memref<3x24x128xf32, #tpu.memory_space<vmem>>, vector<1x24x128xf32>
    %1 = vector.shape_cast %0 : vector<1x24x128xf32> to vector<24x128xf32>
    %cst = arith.constant 0.256789058 : f32
    %2 = vector.broadcast %cst : f32 to vector<24x128xf32>
    %3 = arith.mulf %2, %1 : vector<24x128xf32>
    %c1 = arith.constant 1 : index
    %c0_2 = arith.constant 0 : index
    %c0_3 = arith.constant 0 : index
    %4 = vector.load %arg1[%c1, %c0_2, %c0_3] : memref<3x24x128xf32, #tpu.memory_space<vmem>>, vector<1x24x128xf32>
    %5 = vector.shape_cast %4 : vector<1x24x128xf32> to vector<24x128xf32>
    %cst_4 = arith.constant 0.504128933 : f32
    %6 = vector.broadcast %cst_4 : f32 to vector<24x128xf32>
    %7 = arith.mulf %6, %5 : vector<24x128xf32>
    %8 = arith.addf %3, %7 : vector<24x128xf32>
    %c2 = arith.constant 2 : index
    %c0_5 = arith.constant 0 : index
    %c0_6 = arith.constant 0 : index
    %9 = vector.load %arg1[%c2, %c0_5, %c0_6] : memref<3x24x128xf32, #tpu.memory_space<vmem>>, vector<1x24x128xf32>
    %10 = vector.shape_cast %9 : vector<1x24x128xf32> to vector<24x128xf32>
    %cst_7 = arith.constant 0.0979062467 : f32
    %11 = vector.broadcast %cst_7 : f32 to vector<24x128xf32>
    %12 = arith.mulf %11, %10 : vector<24x128xf32>
    %13 = arith.addf %8, %12 : vector<24x128xf32>
    %c1_i32 = arith.constant 1 : i32
    %14 = tpu.dynamic_rotate %13 by %c1_i32 dim 1 : vector<24x128xf32>, i32 -> vector<24x128xf32>
    %c127_i32 = arith.constant 127 : i32
    %15 = tpu.dynamic_rotate %13 by %c127_i32 dim 1 : vector<24x128xf32>, i32 -> vector<24x128xf32>
    %cst_8 = arith.constant 2.000000e+00 : f32
    %16 = vector.broadcast %cst_8 : f32 to vector<24x128xf32>
    %17 = arith.mulf %16, %13 : vector<24x128xf32>
    %18 = arith.addf %14, %17 : vector<24x128xf32>
    %19 = arith.addf %18, %15 : vector<24x128xf32>
    %20 = arith.subf %15, %14 : vector<24x128xf32>
    %c1_i32_9 = arith.constant 1 : i32
    %21 = tpu.dynamic_rotate %19 by %c1_i32_9 dim 0 : vector<24x128xf32>, i32 -> vector<24x128xf32>
    %c23_i32 = arith.constant 23 : i32
    %22 = tpu.dynamic_rotate %19 by %c23_i32 dim 0 : vector<24x128xf32>, i32 -> vector<24x128xf32>
    %c1_i32_10 = arith.constant 1 : i32
    %23 = tpu.dynamic_rotate %20 by %c1_i32_10 dim 0 : vector<24x128xf32>, i32 -> vector<24x128xf32>
    %c23_i32_11 = arith.constant 23 : i32
    %24 = tpu.dynamic_rotate %20 by %c23_i32_11 dim 0 : vector<24x128xf32>, i32 -> vector<24x128xf32>
    %25 = arith.subf %22, %21 : vector<24x128xf32>
    %cst_12 = arith.constant 2.000000e+00 : f32
    %26 = vector.broadcast %cst_12 : f32 to vector<24x128xf32>
    %27 = arith.mulf %26, %20 : vector<24x128xf32>
    %28 = arith.addf %23, %27 : vector<24x128xf32>
    %29 = arith.addf %28, %24 : vector<24x128xf32>
    %30 = arith.mulf %25, %25 : vector<24x128xf32>
    %31 = arith.mulf %29, %29 : vector<24x128xf32>
    %32 = arith.addf %30, %31 : vector<24x128xf32>
    %cst_13 = arith.constant 9.99999997E-7 : f32
    %33 = vector.broadcast %cst_13 : f32 to vector<24x128xf32>
    %34 = arith.addf %32, %33 : vector<24x128xf32>
    %35 = math.sqrt %34 : vector<24x128xf32>
    %c0_14 = arith.constant 0 : index
    %c0_15 = arith.constant 0 : index
    %36 = vector.load %arg2[%c0_14, %c0_15] : memref<24x128xf32, #tpu.memory_space<vmem>>, vector<24x128xf32>
    tpu.vector_store %arg2[%c0_14, %c0_15], %35 {strides = array<i32>} : memref<24x128xf32, #tpu.memory_space<vmem>>, vector<24x128xf32>,
    return
  }
  func.func @transform_0(%arg0: i32) -> (i32, i32, i32) {
    %c0_i32 = arith.constant 0 : i32
    %c0_i32_0 = arith.constant 0 : i32
    %c0_i32_1 = arith.constant 0 : i32
    return %c0_i32, %arg0, %c0_i32_0 : i32, i32, i32
  }
  func.func @transform_1(%arg0: i32) -> (i32, i32) {
    %c0_i32 = arith.constant 0 : i32
    %c0_i32_0 = arith.constant 0 : i32
    return %arg0, %c0_i32 : i32, i32
  }
}

</mosaic_0001>

<llo_original>
// kernel: tpu_custom_call.1
$region0: #{tpu_custom_call.1}
  #allocation0 [shape = 'u32[]', space=smem, size = 0x4, offset = 0x4, fixed_abs, tag = 'smem constant byte address 0x4 - core index']
  #allocation1 [shape = 'u32[144,128]{1,0:T(1,128)}', space=vmem, size = 0x12000, scoped, tag = 'internal scratch']
  %s0 = inlined_call_operand.hbm [shape: f32[3,24,128], index: 0, kind: input, shape index: {}]
  %s1 = inlined_call_operand.hbm [shape: f32[24,128], index: 1, kind: output, shape index: {}]
  %s2 = sld [smem:[#allocation0]]
  $region18: #{tpu_custom_call.1} parent=0
    _
  %s4 = ssub.s32 1, %s2
  %s5 = scalar_select 0, %s4, %s2
  $region1: #{tpu_custom_call.1} parent=0
    #allocation2 [shape = 'u8[36864]{0}', space=vmem, size = 0x9000, scoped, tag = 'input window, operand 0, single buffered']
    #allocation3 [shape = 's32[1]{0}', space=sflag, size = 0x4, scoped, tag = 'scoped memory for tpu_custom_call.1']
    #allocation4 [shape = 's32[1]{0}', space=sflag, size = 0x4, scoped, tag = 'scoped memory for tpu_custom_call.1']
    #allocation5 [shape = 'u8[12288]{0}', space=vmem, size = 0x3000, scoped, tag = 'output window, operand 0, single buffered']
    %6 = vsyncpa [#allocation3], 0
    %7 = vsyncpa [#allocation4], 0
    // Predicated region
    $region2: #{tpu_custom_call.1} parent=1 // pred_check
      _
    $region3: #{tpu_custom_call.1} parent=1 // pred_check_branch
      %9 = sbr.rel (0) target = $region5
    $region4: #{tpu_custom_call.1} parent=1 // pred_region
      %s11 = ssub.s32 1152, 1152
      %12 = vsyncadd [#allocation3], %s11
      %s13 = sshll.u32 [#allocation2], 4
      %s14 = int_to_ptr.vmem [resolvable:$true] %s13
      %19 = dma.hbm_to_vmem [thread:$0]  %s0, 1152, %s14, [#allocation3], 128, 128, 8
    $region5: #{tpu_custom_call.1} parent=1 // pred_fallthru
      _
    // Predicated region
    $region6: #{tpu_custom_call.1} parent=1 // pred_check
      _
    $region7: #{tpu_custom_call.1} parent=1 // pred_check_branch
      %21 = sbr.rel (0) target = $region9
    $region8: #{tpu_custom_call.1} parent=1 // pred_region
      %22 = dma.done [#allocation3], 1152
    $region9: #{tpu_custom_call.1} parent=1 // pred_fallthru
      _
    %v23 = vld [vmem:[#allocation2] sm:$0xff]
    %v24 = vld [vmem:[#allocation2 + $0x8] sm:$0xff]
    %v25 = vld [vmem:[#allocation2 + $0x10] sm:$0xff]
    %v26 = vmul.f32 %v23, 0.25678906
    %v27 = vmul.f32 %v24, 0.25678906
    %v28 = vmul.f32 %v25, 0.25678906
    %s29 = scalar_lea.vmem [#allocation2], 24
    %v30 = vld [vmem:[%s29] sm:$0xff]
    %v31 = vld [vmem:[%s29 + $0x8] sm:$0xff]
    %v32 = vld [vmem:[%s29 + $0x10] sm:$0xff]
    %v33 = vmul.f32 %v30, 0.50412893
    %v34 = vmul.f32 %v31, 0.50412893
    %v35 = vmul.f32 %v32, 0.50412893
    %v36 = vadd.f32 %v26, %v33
    %v37 = vadd.f32 %v27, %v34
    %v38 = vadd.f32 %v28, %v35
    %s39 = scalar_lea.vmem [#allocation2], 48
    %v40 = vld [vmem:[%s39] sm:$0xff]
    %v41 = vld [vmem:[%s39 + $0x8] sm:$0xff]
    %v42 = vld [vmem:[%s39 + $0x10] sm:$0xff]
    %v43 = vmul.f32 %v40, 0.09790625
    %v44 = vmul.f32 %v41, 0.09790625
    %v45 = vmul.f32 %v42, 0.09790625
    %v46 = vadd.f32 %v36, %v43
    %v47 = vadd.f32 %v37, %v44
    %v48 = vadd.f32 %v38, %v45
    %49 = vrot.lane.b32.xlu0 %v46, 1
    %v50 = vpop.permute.xlu0 %49
    %51 = vrot.lane.b32.xlu0 %v47, 1
    %v52 = vpop.permute.xlu0 %51
    %53 = vrot.lane.b32.xlu0 %v48, 1
    %v54 = vpop.permute.xlu0 %53
    %55 = vrot.lane.b32.xlu0 %v46, 127
    %v56 = vpop.permute.xlu0 %55
    %57 = vrot.lane.b32.xlu0 %v47, 127
    %v58 = vpop.permute.xlu0 %57
    %59 = vrot.lane.b32.xlu0 %v48, 127
    %v60 = vpop.permute.xlu0 %59
    %v61 = vmul.f32 %v46, 2.0
    %v62 = vmul.f32 %v47, 2.0
    %v63 = vmul.f32 %v48, 2.0
    %v64 = vadd.f32 %v50, %v61
    %v65 = vadd.f32 %v52, %v62
    %v66 = vadd.f32 %v54, %v63
    %v67 = vadd.f32 %v64, %v56
    %v68 = vadd.f32 %v65, %v58
    %v69 = vadd.f32 %v66, %v60
    %v70 = vsub.f32 %v56, %v50
    %v71 = vsub.f32 %v58, %v52
    %v72 = vsub.f32 %v60, %v54
    %v73 = vrot.slane %v67, 7
    %v74 = vrot.slane %v68, 7
    %v75 = vrot.slane %v69, 7
    %v76 = vlaneseq
    %v77 = vshrl.u32 %v76, 7
    %vm78 = vcmp.lt.s32.totalorder %v77, 1
    %v79 = vsel %vm78, %v74, %v75
    %v80 = vsel %vm78, %v73, %v74
    %v81 = vsel %vm78, %v75, %v73
    %v82 = vrot.slane %v67, 1
    %v83 = vrot.slane %v68, 1
    %v84 = vrot.slane %v69, 1
    %vm85 = vcmp.lt.s32.totalorder %v77, 7
    %v86 = vsel %vm85, %v83, %v84
    %v87 = vsel %vm85, %v82, %v83
    %v88 = vsel %vm85, %v84, %v82
    %v89 = vrot.slane %v70, 7
    %v90 = vrot.slane %v71, 7
    %v91 = vrot.slane %v72, 7
    %v92 = vsel %vm78, %v90, %v91
    %v93 = vsel %vm78, %v89, %v90
    %v94 = vsel %vm78, %v91, %v89
    %v95 = vrot.slane %v70, 1
    %v96 = vrot.slane %v71, 1
    %v97 = vrot.slane %v72, 1
    %v98 = vsel %vm85, %v96, %v97
    %v99 = vsel %vm85, %v95, %v96
    %v100 = vsel %vm85, %v97, %v95
    %v101 = vsub.f32 %v87, %v81
    %v102 = vsub.f32 %v86, %v80
    %v103 = vsub.f32 %v88, %v79
    %v104 = vmul.f32 %v70, 2.0
    %v105 = vmul.f32 %v71, 2.0
    %v106 = vmul.f32 %v72, 2.0
    %v107 = vadd.f32 %v94, %v104
    %v108 = vadd.f32 %v93, %v105
    %v109 = vadd.f32 %v92, %v106
    %v110 = vadd.f32 %v107, %v99
    %v111 = vadd.f32 %v108, %v98
    %v112 = vadd.f32 %v109, %v100
    %v113 = vmul.f32 %v101, %v101
    %v114 = vmul.f32 %v102, %v102
    %v115 = vmul.f32 %v103, %v103
    %v116 = vmul.f32 %v110, %v110
    %v117 = vmul.f32 %v111, %v111
    %v118 = vmul.f32 %v112, %v112
    %v119 = vadd.f32 %v113, %v116
    %v120 = vadd.f32 %v114, %v117
    %v121 = vadd.f32 %v115, %v118
    %v122 = vadd.f32 %v119, 1e-06
    %v123 = vadd.f32 %v120, 1e-06
    %v124 = vadd.f32 %v121, 1e-06
    %v125 = vrsqrt.pop %v122
    %v126 = vmul.f32 %v122, %v125
    %vm127 = vcmp.eq.f32.partialorder %v122, inf
    %v128 = vsel %vm127, %v122, %v126
    %vm129 = vcmp.eq.f32.partialorder %v122, 0.0
    %v130 = vand.u32 %v122, 2147483648
    %v131 = vsel %vm129, %v130, %v128
    %v132 = vrsqrt.pop %v123
    %v133 = vmul.f32 %v123, %v132
    %vm134 = vcmp.eq.f32.partialorder %v123, inf
    %v135 = vsel %vm134, %v123, %v133
    %vm136 = vcmp.eq.f32.partialorder %v123, 0.0
    %v137 = vand.u32 %v123, 2147483648
    %v138 = vsel %vm136, %v137, %v135
    %v139 = vrsqrt.pop %v124
    %v140 = vmul.f32 %v124, %v139
    %vm141 = vcmp.eq.f32.partialorder %v124, inf
    %v142 = vsel %vm141, %v124, %v140
    %vm143 = vcmp.eq.f32.partialorder %v124, 0.0
    %v144 = vand.u32 %v124, 2147483648
    %v145 = vsel %vm143, %v144, %v142
    %146 = vst [vmem:[#allocation5] sm:$0xff] %v131
    %147 = vst [vmem:[#allocation5 + $0x8] sm:$0xff] %v138
    %148 = vst [vmem:[#allocation5 + $0x10] sm:$0xff] %v145
    // Predicated region
    $region10: #{tpu_custom_call.1} parent=1 // pred_check
      _
    $region11: #{tpu_custom_call.1} parent=1 // pred_check_branch
      %150 = sbr.rel (0) target = $region13
    $region12: #{tpu_custom_call.1} parent=1 // pred_region
      %s152 = ssub.s32 384, 384
      %153 = vsyncadd [#allocation4], %s152
      %s154 = sshll.u32 [#allocation5], 4
      %s155 = int_to_ptr.vmem [resolvable:$true] %s154
      %160 = dma.vmem_to_hbm [thread:$0]  %s155, 384, %s1, [#allocation4], 128, 128, 8
    $region13: #{tpu_custom_call.1} parent=1 // pred_fallthru
      _
    // Predicated region
    $region14: #{tpu_custom_call.1} parent=1 // pred_check
      _
    $region15: #{tpu_custom_call.1} parent=1 // pred_check_branch
      %162 = sbr.rel (0) target = $region17
    $region16: #{tpu_custom_call.1} parent=1 // pred_region
      %163 = dma.done [#allocation4], 384
    $region17: #{tpu_custom_call.1} parent=1 // pred_fallthru
      _
    %164 = vsyncpa [#allocation3], 1
    %165 = vsyncpa [#allocation4], 1

</llo_original>
